<compile_context>
chip_gen: v5e
topology: v5e:2x2
jax: 0.10.0
libtpu: 0.0.40
codegen_flags: <defaults>
</compile_context>

<pallas_src>
import jax
import jax.numpy as jnp
from jax.experimental import pallas as pl
from jax.experimental.pallas import tpu as pltpu


def _linear_double_kernel(x_ref, wb_ref, o_ref):
    # x_ref : (M, K)        activations
    # wb_ref: (K + 1, N)    rows 0..K-1 = W^T (lane-major over N), row K = bias
    # o_ref : (M, N)
    x = x_ref[...].astype(jnp.float32)
    wb = wb_ref[...].astype(jnp.float32)
    k_dim = x_ref.shape[1]

    # Start from the broadcast bias row, then unrolled VPU multiply-adds over
    # the tiny (K=2) contraction dimension — no MXU, no transpose.
    y = wb[k_dim:k_dim + 1, :]                      # (1, N) -> broadcasts over M
    for k in range(k_dim):                          # static unroll (K is tiny)
        y = y + x[:, k:k + 1] * wb[k:k + 1, :]      # (M,1)*(1,N) -> (M,N)

    # Fused 2x epilogue in f32, then cast to the output dtype.
    o_ref[...] = (2.0 * y).astype(o_ref.dtype)


def linear_double(x, weight, bias):
    """Computes 2 * (x @ weight.T + bias) for x of shape (B, S, F_in)."""
    B, S, F_in = x.shape
    F_out = weight.shape[0]
    M = B * S

    x2d = x.reshape(M, F_in)
    # Pack W^T (K, N) and bias (1, N) into a single parameter operand.
    wb = jnp.concatenate([weight.T, bias.reshape(1, F_out)], axis=0)

    itemsize = jnp.dtype(x.dtype).itemsize
    cost = pl.CostEstimate(
        flops=2 * M * F_out * F_in + 2 * M * F_out,   # MACs + bias + 2x scale
        bytes_accessed=(x2d.size + wb.size + M * F_out) * itemsize,
        transcendentals=0,
    )

    out2d = pl.pallas_call(
        _linear_double_kernel,
        out_shape=jax.ShapeDtypeStruct((M, F_out), x.dtype),
        # Grid-less call: each array is a single whole-array VMEM block.
        in_specs=[
            pl.BlockSpec(memory_space=pltpu.MemorySpace.VMEM),
            pl.BlockSpec(memory_space=pltpu.MemorySpace.VMEM),
        ],
        out_specs=pl.BlockSpec(memory_space=pltpu.MemorySpace.VMEM),
        cost_estimate=cost,
    )(x2d, wb)

    return out2d.reshape(B, S, F_out)


if __name__ == "__main__":
    key = jax.random.PRNGKey(0)
    kx, kw, kb = jax.random.split(key, 3)

    # Module: nn.Linear(2, 2); input x ~ (1, 2, 2)
    B, S, F_in, F_out = 1, 2, 2, 2
    x = jax.random.normal(kx, (B, S, F_in), dtype=jnp.float32)
    # PyTorch-like uniform(-1/sqrt(F_in), 1/sqrt(F_in)) init
    bound = 1.0 / jnp.sqrt(jnp.float32(F_in))
    weight = jax.random.uniform(kw, (F_out, F_in), jnp.float32, -bound, bound)
    bias = jax.random.uniform(kb, (F_out,), jnp.float32, -bound, bound)

    out = linear_double(x, weight, bias)
    out = jax.block_until_ready(out)

    # Reference check against plain JAX
    ref = 2.0 * (jnp.einsum("bsf,of->bso", x, weight) + bias)
    assert out.shape == (B, S, F_out)
    assert jnp.allclose(out, ref, atol=1e-5), "mismatch vs reference"

    print("KERNEL_OK")
</pallas_src>

<mosaic_0001>
module attributes {stable_mosaic.version = 11 : i64} {
  func.func @_linear_double_kernel(%arg0: memref<2x2xf32, #tpu.memory_space<vmem>>, %arg1: memref<3x2xf32, #tpu.memory_space<vmem>>, %arg2: memref<2x2xf32, #tpu.memory_space<vmem>>) attributes {dimension_semantics = [], scalar_prefetch = 0 : i64, scratch_operands = 0 : i64, tpu.core_type = #tpu.core_type<tc>} {
    %c0 = arith.constant 0 : index
    %c0_0 = arith.constant 0 : index
    %0 = vector.load %arg0[%c0, %c0_0] : memref<2x2xf32, #tpu.memory_space<vmem>>, vector<2x2xf32>
    %c0_1 = arith.constant 0 : index
    %c0_2 = arith.constant 0 : index
    %1 = vector.load %arg1[%c0_1, %c0_2] : memref<3x2xf32, #tpu.memory_space<vmem>>, vector<3x2xf32>
    %2 = vector.extract_strided_slice %1 {offsets = [2, 0], sizes = [1, 2], strides = [1, 1]} : vector<3x2xf32> to vector<1x2xf32>
    %3 = vector.extract_strided_slice %0 {offsets = [0, 0], sizes = [2, 1], strides = [1, 1]} : vector<2x2xf32> to vector<2x1xf32>
    %4 = vector.extract_strided_slice %1 {offsets = [0, 0], sizes = [1, 2], strides = [1, 1]} : vector<3x2xf32> to vector<1x2xf32>
    %5 = vector.broadcast %3 : vector<2x1xf32> to vector<2x2xf32>
    %6 = vector.broadcast %4 : vector<1x2xf32> to vector<2x2xf32>
    %7 = arith.mulf %5, %6 : vector<2x2xf32>
    %8 = vector.broadcast %2 : vector<1x2xf32> to vector<2x2xf32>
    %9 = arith.addf %8, %7 : vector<2x2xf32>
    %10 = vector.extract_strided_slice %0 {offsets = [0, 1], sizes = [2, 1], strides = [1, 1]} : vector<2x2xf32> to vector<2x1xf32>
    %11 = vector.extract_strided_slice %1 {offsets = [1, 0], sizes = [1, 2], strides = [1, 1]} : vector<3x2xf32> to vector<1x2xf32>
    %12 = vector.broadcast %10 : vector<2x1xf32> to vector<2x2xf32>
    %13 = vector.broadcast %11 : vector<1x2xf32> to vector<2x2xf32>
    %14 = arith.mulf %12, %13 : vector<2x2xf32>
    %15 = arith.addf %9, %14 : vector<2x2xf32>
    %cst = arith.constant 2.000000e+00 : f32
    %16 = vector.broadcast %cst : f32 to vector<2x2xf32>
    %17 = arith.mulf %16, %15 : vector<2x2xf32>
    %c0_3 = arith.constant 0 : index
    %c0_4 = arith.constant 0 : index
    %18 = vector.load %arg2[%c0_3, %c0_4] : memref<2x2xf32, #tpu.memory_space<vmem>>, vector<2x2xf32>
    tpu.vector_store %arg2[%c0_3, %c0_4], %17 {strides = array<i32>} : memref<2x2xf32, #tpu.memory_space<vmem>>, vector<2x2xf32>,
    return
  }
}

</mosaic_0001>

<llo_original>
// kernel: tpu_custom_call.1
$region0: #{tpu_custom_call.1}
  #allocation0 [shape = 'u32[]', space=smem, size = 0x4, offset = 0x4, fixed_abs, tag = 'smem constant byte address 0x4 - core index']
  #allocation1 [shape = 'u32[72,128]{1,0:T(1,128)}', space=vmem, size = 0x9000, scoped, tag = 'internal scratch']
  %s0 = inlined_call_operand.vmem [shape: f32[2,2], index: 0, kind: input, shape index: {}]
  %s1 = inlined_call_operand.vmem [shape: f32[3,2], index: 1, kind: input, shape index: {}]
  %s2 = inlined_call_operand.hbm [shape: f32[2,2], index: 2, kind: output, shape index: {}]
  %s3 = sld [smem:[#allocation0]]
  $region18: #{tpu_custom_call.1} parent=0
    _
  %s5 = ssub.s32 1, %s3
  %s6 = scalar_select 0, %s5, %s3
  $region1: #{tpu_custom_call.1} parent=0
    #allocation2 [shape = 'u8[1024]{0}', space=vmem, size = 0x400, scoped, tag = 'output window, operand 0, single buffered']
    #allocation3 [shape = 's32[1]{0}', space=sflag, size = 0x4, scoped, tag = 'scoped memory for tpu_custom_call.1']
    %7 = vsyncpa [#allocation3], 0
    // Predicated region
    $region2: #{tpu_custom_call.1} parent=1 // pred_check
      _
    $region3: #{tpu_custom_call.1} parent=1 // pred_check_branch
      %9 = sbr.rel (0) target = $region5
    $region4: #{tpu_custom_call.1} parent=1 // pred_region
      _
    $region5: #{tpu_custom_call.1} parent=1 // pred_fallthru
      _
    // Predicated region
    $region6: #{tpu_custom_call.1} parent=1 // pred_check
      _
    $region7: #{tpu_custom_call.1} parent=1 // pred_check_branch
      %11 = sbr.rel (0) target = $region9
    $region8: #{tpu_custom_call.1} parent=1 // pred_region
      _
    $region9: #{tpu_custom_call.1} parent=1 // pred_fallthru
      _
    %v12 = vld [vmem:[%s0] sm:$0x3]
    %v13 = vld [vmem:[%s1] sm:$0x7]
    %15 = vset.pattern.permute.xlu0 0
    %16 = vperm.xlu0 %15, %v12
    %v17 = vpop.permute.xlu0 %16
    %v19 = vperm.slane %v13, 0
    %v20 = vmul.f32 %v17, %v19
    %v21 = vperm.slane %v13, 2
    %v22 = vadd.f32 %v21, %v20
    %23 = vset.pattern.permute.xlu0 1
    %24 = vperm.xlu0 %23, %v12
    %v25 = vpop.permute.xlu0 %24
    %v27 = vperm.slane %v13, 1
    %v28 = vmul.f32 %v25, %v27
    %v29 = vadd.f32 %v22, %v28
    %v30 = vmul.f32 %v29, 2.0
    %vm31 = vcmask 9216
    %32 = vst.msk [vmem:[#allocation2] sm:$0x3] %vm31, %v30
    // Predicated region
    $region10: #{tpu_custom_call.1} parent=1 // pred_check
      _
    $region11: #{tpu_custom_call.1} parent=1 // pred_check_branch
      %34 = sbr.rel (0) target = $region13
    $region12: #{tpu_custom_call.1} parent=1 // pred_region
      %36 = vsyncadd [#allocation3], 0
      %s38 = sshll.u32 [#allocation2], 4
      %s39 = int_to_ptr.vmem [resolvable:$true] %s38
      %s40 = sshll.u32 %s2, 4
      %s41 = int_to_ptr.hbm [resolvable:$true] %s40
      %43 = dma.vmem_to_hbm [thread:$0]  %s39, 32, %s41, [#allocation3]
    $region13: #{tpu_custom_call.1} parent=1 // pred_fallthru
      _
    // Predicated region
    $region14: #{tpu_custom_call.1} parent=1 // pred_check
      _
    $region15: #{tpu_custom_call.1} parent=1 // pred_check_branch
      %45 = sbr.rel (0) target = $region17
    $region16: #{tpu_custom_call.1} parent=1 // pred_region
      %47 = dma.done [#allocation3], 32
    $region17: #{tpu_custom_call.1} parent=1 // pred_fallthru
      _
    %48 = vsyncpa [#allocation3], 1

</llo_original>
